<compile_context>
chip_gen: v5e
topology: v5e:2x2
jax: 0.10.0
libtpu: 0.0.40
codegen_flags: <defaults>
</compile_context>

<pallas_src>
import functools

import jax
import jax.numpy as jnp
from jax.experimental import pallas as pl
from jax.experimental.pallas import tpu as pltpu


def _ssam_kernel(x_ref, t_ref, out_ref, *, w, h, normalise):
    # x_ref:  (BR, HW) block of logits (original dtype, cast here)
    # t_ref:  (1,)     temperature scalar in SMEM
    # out_ref:(BR, 2)  [expected_x, expected_y] per row
    hw = x_ref.shape[-1]

    inv_t = 1.0 / t_ref[0]                         # one scalar reciprocal per step
    x = x_ref[...].astype(jnp.float32) * inv_t

    # numerically stable softmax numerator over the spatial axis
    m = jnp.max(x, axis=-1, keepdims=True)
    e = jnp.exp(x - m)
    s = jnp.sum(e, axis=-1, keepdims=True)
    inv_s = pl.reciprocal(s, approx=False)         # exact, per-row only (BR elems)

    # pixel coordinates generated in-kernel (no DMA streams):
    # flattened index f -> (col = f mod w, row = f div w) via a float floor trick
    # (the +0.5 offset makes the floor robust to fp rounding of the division).
    idx = jax.lax.broadcasted_iota(jnp.int32, (1, hw), 1).astype(jnp.float32)
    cy = jnp.floor((idx + 0.5) / w)
    cx = idx - cy * w

    ex = jnp.sum(e * cx, axis=-1, keepdims=True) * inv_s
    ey = jnp.sum(e * cy, axis=-1, keepdims=True) * inv_s

    if normalise:  # affine map commutes with the expectation (weights sum to 1)
        ex = ex * (2.0 / (w - 1)) - 1.0
        ey = ey * (2.0 / (h - 1)) - 1.0

    out_ref[:, 0:1] = ex
    out_ref[:, 1:2] = ey


def _round_up(a, b):
    return -(-a // b) * b


def _choose_block_rows(nc, hw, in_bytes):
    # Size the double-buffered input tile to sit comfortably inside the default
    # scoped VMEM of every generation (v5e: 16 MiB scoped, v6e/v7x: 32 MiB scoped,
    # v7x: 64 MiB physical); vmem_limit_bytes is also raised to 32 MiB below.
    budget = 12 * 1024 * 1024
    per_row = 2 * hw * in_bytes + 2 * 2 * 4        # dbl-buffered input + output row
    br = budget // per_row
    br = max(8, min(1024, (br // 8) * 8))
    br = min(br, _round_up(nc, 8))                 # no bigger than the padded rows
    if nc >= 16:
        # keep >= 2 grid steps when possible so both v7x TensorCores get rows
        br = min(br, _round_up(-(-nc // 2), 8))
    return max(br, 8)


@functools.partial(jax.jit, static_argnames=("normalise",))
def spatial_soft_argmax(x, temperature, normalise=False):
    """x: (N, C, H, W). Returns (N, C, 2) float32 expected (x, y) coordinates."""
    n, c, h, w = x.shape
    nc, hw = n * c, h * w

    # Keep the original dtype here (no wrapper fp32 materialization); the kernel casts.
    x2 = x.reshape(nc, hw)

    in_bytes = jnp.dtype(x.dtype).itemsize
    br = _choose_block_rows(nc, hw, in_bytes)
    grid_rows = -(-nc // br)                       # cdiv
    nc_pad = grid_rows * br
    if nc_pad != nc:
        # wrapper-side row padding; padded rows are sliced away below
        x2 = jnp.pad(x2, ((0, nc_pad - nc), (0, 0)))

    t = jnp.asarray(temperature, dtype=jnp.float32).reshape(1)

    kernel = functools.partial(_ssam_kernel, w=w, h=h, normalise=normalise)

    out = pl.pallas_call(
        kernel,
        out_shape=jax.ShapeDtypeStruct((nc_pad, 2), jnp.float32),
        grid_spec=pltpu.PrefetchScalarGridSpec(
            num_scalar_prefetch=0,
            grid=(grid_rows,),
            in_specs=[
                pl.BlockSpec((br, hw), lambda i: (i, 0)),
                pl.BlockSpec(memory_space=pltpu.SMEM),
            ],
            out_specs=pl.BlockSpec((br, 2), lambda i: (i, 0)),
        ),
        compiler_params=pltpu.CompilerParams(
            dimension_semantics=("parallel",),
            vmem_limit_bytes=32 * 1024 * 1024,
        ),
    )(x2, t)

    return out[:nc].reshape(n, c, 2)


def _reference(x, temperature, normalise=False):
    n, c, h, w = x.shape
    p = jax.nn.softmax(
        x.reshape(n * c, h * w).astype(jnp.float32) / temperature, axis=1
    ).reshape(n, c, h, w)
    x_range = jnp.arange(w, dtype=jnp.float32)
    y_range = jnp.arange(h, dtype=jnp.float32)
    if normalise:
        x_range = x_range / (w - 1) * 2 - 1
        y_range = y_range / (h - 1) * 2 - 1
    image_x = jnp.broadcast_to(x_range[None, :], (h, w))
    image_y = jnp.broadcast_to(y_range[:, None], (h, w))
    coords = jnp.stack([image_x, image_y], axis=-1)  # (h, w, 2)
    return jnp.sum(p[..., None] * coords[None, None], axis=(2, 3))


if __name__ == "__main__":
    key = jax.random.PRNGKey(0)
    n, c, h, w = 2, 4, 16, 16
    x = jax.random.normal(key, (n, c, h, w), dtype=jnp.float32)

    # Deterministic parameter init: temperature = ones(1) (nn.Parameter default)
    temperature = jnp.ones((1,), dtype=jnp.float32)

    out = spatial_soft_argmax(x, temperature, normalise=False)
    out = jax.block_until_ready(out)

    ref = _reference(x, temperature, normalise=False)
    assert out.shape == (n, c, 2)
    assert jnp.allclose(out, ref, atol=1e-4, rtol=1e-4), "mismatch vs reference"

    print("KERNEL_OK")
</pallas_src>

<mosaic_0001>
module attributes {stable_mosaic.version = 11 : i64} {
  func.func @_ssam_kernel(%arg0: i32, %arg1: memref<8x256xf32, #tpu.memory_space<vmem>>, %arg2: memref<1xf32, #tpu.memory_space<smem>>, %arg3: memref<8x2xf32, #tpu.memory_space<vmem>>) attributes {dimension_semantics = [#tpu.dimension_semantics<parallel>], iteration_bounds = array<i64: 1>, scalar_prefetch = 0 : i64, scratch_operands = 0 : i64, tpu.core_type = #tpu.core_type<tc>, window_params = [{transform_indices = @transform_0, window_bounds = array<i64: 8, 256>}, {transform_indices = @transform_1, window_bounds = array<i64: 1>}, {transform_indices = @transform_2, window_bounds = array<i64: 8, 2>}]} {
    %c0 = arith.constant 0 : index
    %0 = memref.load %arg2[%c0] : memref<1xf32, #tpu.memory_space<smem>>
    %cst = arith.constant 1.000000e+00 : f32
    %1 = arith.divf %cst, %0 : f32
    %c0_0 = arith.constant 0 : index
    %c0_1 = arith.constant 0 : index
    %2 = vector.load %arg1[%c0_0, %c0_1] : memref<8x256xf32, #tpu.memory_space<vmem>>, vector<8x256xf32>
    %3 = vector.broadcast %1 : f32 to vector<8x256xf32>
    %4 = arith.mulf %2, %3 : vector<8x256xf32>
    %cst_2 = arith.constant dense<0xFF800000> : vector<8xf32>
    %5 = vector.multi_reduction <maximumf>, %4, %cst_2 [1] : vector<8x256xf32> to vector<8xf32>
    %6 = vector.shape_cast %5 : vector<8xf32> to vector<8x1xf32>
    %7 = vector.broadcast %6 : vector<8x1xf32> to vector<8x256xf32>
    %8 = arith.subf %4, %7 : vector<8x256xf32>
    %9 = math.exp %8 : vector<8x256xf32>
    %cst_3 = arith.constant dense<0.000000e+00> : vector<8xf32>
    %10 = vector.multi_reduction <add>, %9, %cst_3 [1] : vector<8x256xf32> to vector<8xf32>
    %11 = vector.shape_cast %10 : vector<8xf32> to vector<8x1xf32>
    %12 = tpu.reciprocal %11 : vector<8x1xf32> -> vector<8x1xf32>
    %13 = tpu.iota {dimensions = array<i32: 1>} : vector<1x256xi32>
    %14 = arith.sitofp %13 : vector<1x256xi32> to vector<1x256xf32>
    %cst_4 = arith.constant 5.000000e-01 : f32
    %15 = vector.broadcast %cst_4 : f32 to vector<1x256xf32>
    %16 = arith.addf %14, %15 : vector<1x256xf32>
    %cst_5 = arith.constant 1.600000e+01 : f32
    %17 = vector.broadcast %cst_5 : f32 to vector<1x256xf32>
    %18 = arith.divf %16, %17 : vector<1x256xf32>
    %19 = math.floor %18 : vector<1x256xf32>
    %cst_6 = arith.constant 1.600000e+01 : f32
    %20 = vector.broadcast %cst_6 : f32 to vector<1x256xf32>
    %21 = arith.mulf %19, %20 : vector<1x256xf32>
    %22 = arith.subf %14, %21 : vector<1x256xf32>
    %23 = vector.broadcast %22 : vector<1x256xf32> to vector<8x256xf32>
    %24 = arith.mulf %9, %23 : vector<8x256xf32>
    %cst_7 = arith.constant dense<0.000000e+00> : vector<8xf32>
    %25 = vector.multi_reduction <add>, %24, %cst_7 [1] : vector<8x256xf32> to vector<8xf32>
    %26 = vector.shape_cast %25 : vector<8xf32> to vector<8x1xf32>
    %27 = arith.mulf %26, %12 : vector<8x1xf32>
    %28 = vector.broadcast %19 : vector<1x256xf32> to vector<8x256xf32>
    %29 = arith.mulf %9, %28 : vector<8x256xf32>
    %cst_8 = arith.constant dense<0.000000e+00> : vector<8xf32>
    %30 = vector.multi_reduction <add>, %29, %cst_8 [1] : vector<8x256xf32> to vector<8xf32>
    %31 = vector.shape_cast %30 : vector<8xf32> to vector<8x1xf32>
    %32 = arith.mulf %31, %12 : vector<8x1xf32>
    %c0_9 = arith.constant 0 : index
    %c0_10 = arith.constant 0 : index
    %33 = vector.load %arg3[%c0_9, %c0_10] : memref<8x2xf32, #tpu.memory_space<vmem>>, vector<8x1xf32>
    tpu.vector_store %arg3[%c0_9, %c0_10], %27 {strides = array<i32>} : memref<8x2xf32, #tpu.memory_space<vmem>>, vector<8x1xf32>,
    %c0_11 = arith.constant 0 : index
    %c1 = arith.constant 1 : index
    %34 = vector.load %arg3[%c0_11, %c1] : memref<8x2xf32, #tpu.memory_space<vmem>>, vector<8x1xf32>
    tpu.vector_store %arg3[%c0_11, %c1], %32 {strides = array<i32>} : memref<8x2xf32, #tpu.memory_space<vmem>>, vector<8x1xf32>,
    return
  }
  func.func @transform_0(%arg0: i32) -> (i32, i32) {
    %c0_i32 = arith.constant 0 : i32
    %c0_i32_0 = arith.constant 0 : i32
    return %arg0, %c0_i32 : i32, i32
  }
  func.func @transform_1(%arg0: i32) -> i32 {
    %c0_i32 = arith.constant 0 : i32
    %c0_i32_0 = arith.constant 0 : i32
    return %c0_i32 : i32
  }
  func.func @transform_2(%arg0: i32) -> (i32, i32) {
    %c0_i32 = arith.constant 0 : i32
    %c0_i32_0 = arith.constant 0 : i32
    return %arg0, %c0_i32 : i32, i32
  }
}

</mosaic_0001>

<llo_original>
// kernel: spatial_soft_argmax.1
$region0: #{spatial_soft_argmax.1}
  #allocation0 [shape = 'u32[]', space=smem, size = 0x4, offset = 0x4, fixed_abs, tag = 'smem constant byte address 0x4 - core index']
  #allocation1 [shape = 'u32[72,128]{1,0:T(1,128)}', space=vmem, size = 0x9000, scoped, tag = 'internal scratch']
  #allocation2 [shape = 'f32[1]{0:T(128)S(6)}', space=smem, size = 0x200, scoped, tag = 'scoped memory for spatial_soft_argmax.1']
  %s0 = inlined_call_operand.vmem [shape: f32[8,256], index: 0, kind: input, shape index: {}]
  %s1 = inlined_call_operand.<no memory space> [shape: f32[1], index: 1, kind: input, shape index: {}]
  %s2 = inlined_call_operand.vmem [shape: f32[8,2], index: 2, kind: output, shape index: {}]
  %s3 = sld [smem:[#allocation0]]
  $region18: #{spatial_soft_argmax.1} parent=0
    _
  %s5 = ssub.s32 1, %s3
  %s6 = scalar_select 0, %s5, %s3
  %7 = sst [smem:[#allocation2]] %s1
  // Predicated region
  $region2: #{spatial_soft_argmax.1} parent=0 // pred_check
    _
  $region3: #{spatial_soft_argmax.1} parent=0 // pred_check_branch
    %9 = sbr.rel (0) target = $region5
  $region4: #{spatial_soft_argmax.1} parent=0 // pred_region
    _
  $region5: #{spatial_soft_argmax.1} parent=0 // pred_fallthru
    _
  // Predicated region
  $region6: #{spatial_soft_argmax.1} parent=0 // pred_check
    _
  $region7: #{spatial_soft_argmax.1} parent=0 // pred_check_branch
    %11 = sbr.rel (0) target = $region9
  $region8: #{spatial_soft_argmax.1} parent=0 // pred_region
    _
  $region9: #{spatial_soft_argmax.1} parent=0 // pred_fallthru
    _
  %s12 = sld [smem:[#allocation2]]
  %v13 = vstv %s12
  %v14 = vrcp.pop %v13
  %v15 = vmul.f32 %v13, %v14
  %v16 = vsub.f32 1.0, %v15
  %v17 = vmul.f32 %v14, %v16
  %v18 = vadd.f32 %v14, %v17
  %vm19 = vweird.f32 %v13
  %vm20 = vweird.f32 %v14
  %vm21 = vmor %vm19, %vm20
  %v22 = vsel %vm21, %v14, %v18
  %v23 = vand.u32 2147483647, %v13
  %vm24 = vcmp.eq.f32.partialorder %v23, 8.507059e+37
  %v25 = vand.u32 %v13, 2147483648
  %v26 = vor.u32 1.1754944e-38, %v25
  %v27 = vsel %vm24, %v26, %v22
  %s28 = vtos %v27
  %v29 = vld [vmem:[%s0] sm:$0xff]
  %v30 = vld [vmem:[%s0 + $0x8] sm:$0xff]
  %v31 = vstv %s28
  %v32 = vmul.f32 %v29, %v31
  %v33 = vmul.f32 %v30, %v31
  %v34 = vmax.f32 %v32, %v33
  %35 = vmax.xlane.f32.xlu0 %v34
  %v36 = vpop.xlane.xlu0 %35
  %v37 = vsub.f32 %v32, %v36
  %v38 = vsub.f32 %v33, %v36
  %v39 = vmul.f32 %v37, 1.442695
  %v40 = vpow.pop %v39
  %v41 = vmul.f32 %v38, 1.442695
  %v42 = vpow.pop %v41
  %v43 = vadd.f32 %v40, %v42
  %44 = vadd.xlane.f32.xlu0 %v43
  %v45 = vpop.xlane.xlu0 %44
  %v46 = vrcp.pop %v45
  %v47 = vmul.f32 %v45, %v46
  %v48 = vsub.f32 1.0, %v47
  %v49 = vmul.f32 %v46, %v48
  %v50 = vadd.f32 %v46, %v49
  %vm51 = vweird.f32 %v45
  %vm52 = vweird.f32 %v46
  %vm53 = vmor %vm51, %vm52
  %v54 = vsel %vm53, %v46, %v50
  %v55 = vand.u32 2147483647, %v45
  %vm56 = vcmp.eq.f32.partialorder %v55, 8.507059e+37
  %v57 = vand.u32 %v45, 2147483648
  %v58 = vor.u32 1.1754944e-38, %v57
  %v59 = vsel %vm56, %v58, %v54
  %v60 = vlaneseq
  %v61 = vand.u32 %v60, 127
  %v62 = vadd.s32 %v61, 128
  %v63 = vcvt.s32.f32 %v61
  %v64 = vcvt.s32.f32 %v62
  %v65 = vadd.f32 %v63, 0.5
  %v66 = vadd.f32 %v64, 0.5
  %v67 = vrcp.pop 16.0
  %v68 = vmul.f32 16.0, %v67
  %v69 = vsub.f32 1.0, %v68
  %v70 = vmul.f32 %v67, %v69
  %v71 = vadd.f32 %v67, %v70
  %vm72 = vweird.f32 %v67
  %v73 = vsel %vm72, %v67, %v71
  %v74 = vmul.f32 %v65, %v73
  %v75 = vmul.f32 %v66, %v73
  %v76 = vfloor.f32 %v74
  %v77 = vfloor.f32 %v75
  %v78 = vmul.f32 %v76, 16.0
  %v79 = vmul.f32 %v77, 16.0
  %v80 = vsub.f32 %v63, %v78
  %v81 = vsub.f32 %v64, %v79
  %v82 = vmul.f32 %v40, %v80
  %v83 = vmul.f32 %v42, %v81
  %v84 = vadd.f32 %v82, %v83
  %85 = vadd.xlane.f32.xlu0 %v84
  %v86 = vpop.xlane.xlu0 %85
  %v87 = vmul.f32 %v86, %v59
  %v88 = vmul.f32 %v40, %v76
  %v89 = vmul.f32 %v42, %v77
  %v90 = vadd.f32 %v88, %v89
  %91 = vadd.xlane.f32.xlu0 %v90
  %v92 = vpop.xlane.xlu0 %91
  %v93 = vmul.f32 %v92, %v59
  %vm94 = vcmask 7168
  %95 = vst.msk [vmem:[%s2] sm:$0xff] %vm94, %v87
  %vm96 = vcmask 15368
  %97 = vst.msk [vmem:[%s2] sm:$0xff] %vm96, %v93
  // Predicated region
  $region10: #{spatial_soft_argmax.1} parent=0 // pred_check
    _
  $region11: #{spatial_soft_argmax.1} parent=0 // pred_check_branch
    %99 = sbr.rel (0) target = $region13
  $region12: #{spatial_soft_argmax.1} parent=0 // pred_region
    _
  $region13: #{spatial_soft_argmax.1} parent=0 // pred_fallthru
    _
  // Predicated region
  $region14: #{spatial_soft_argmax.1} parent=0 // pred_check
    _
  $region15: #{spatial_soft_argmax.1} parent=0 // pred_check_branch
    %101 = sbr.rel (0) target = $region17
  $region16: #{spatial_soft_argmax.1} parent=0 // pred_region
    _
  $region17: #{spatial_soft_argmax.1} parent=0 // pred_fallthru
    _

</llo_original>
